<compile_context>
chip_gen: v5e
topology: v5e:2x2
jax: 0.10.0
libtpu: 0.0.40
codegen_flags: <defaults>
</compile_context>

<pallas_src>
import functools

import jax
import jax.numpy as jnp
from jax.experimental import pallas as pl
from jax.experimental.pallas import tpu as pltpu


LANE_PAD = 128  # lane-dense slab width for weights/biases (vreg lane count)


def _round_up(x, m):
    return ((x + m - 1) // m) * m


def _cdiv(a, b):
    return -(-a // b)


def _mlp_kernel(n_layers, in_dim, out_dim, x_ref, w_ref, b_ref, out_ref):
    """x_ref: [tile_b, in_dim] (stream dtype), w_ref: [L, 128, 128] (bf16 or f32),
    b_ref: [L, 1, 128] f32, out_ref: [tile_b, out_dim] f32."""
    h = x_ref[...]
    for li in range(n_layers):                       # static unroll over layers
        w = w_ref[li]                                # (128, 128), resident in VMEM
        if li == 0 and in_dim < w.shape[0]:
            w = w[:in_dim, :]                        # only the real input rows (K = in_dim)
        b = b_ref[li]                                # (1, 128) f32
        h = jnp.dot(h.astype(w.dtype), w,
                    preferred_element_type=jnp.float32) + b
        if li < n_layers - 1:                        # hidden activation = ReLU
            h = jnp.maximum(h, 0.0)
    # TODO(synk): output_activation is None in the reference config; apply here if ever needed.
    out_ref[...] = h[:, :out_dim].astype(out_ref.dtype)


def fold_and_pack_params(input_mean, input_std, weights, biases,
                         *, weight_dtype=jnp.bfloat16, pad=LANE_PAD):
    """One-time prep: fold normalization and pack params into two lane-dense slabs.

    normalize_input: zero_mask = 1 where std == 0 else 0;
                     xn = (x - mean) / (std + zero_mask) = x*inv - mean*inv.
    The per-feature scale `inv` is returned and applied to x in the wrapper (tiny,
    exact f32); the mean shift is folded into the layer-0 bias in f32. Layer-0
    weights therefore stay unscaled, which keeps the bf16 cast well-behaved even
    when input_std has small entries.

    weights[i]: [d_in, d_out] (transposed PyTorch layout), biases[i]: [d_out].
    Returns (w_slab [L,pad,pad] weight_dtype, b_slab [L,1,pad] f32, inv [in_dim] f32).
    """
    input_mean = jnp.asarray(input_mean, jnp.float32)
    input_std = jnp.asarray(input_std, jnp.float32)
    zero_mask = jnp.where(input_std == 0.0, 1.0, 0.0)
    inv = 1.0 / (input_std + zero_mask)

    w0 = jnp.asarray(weights[0], jnp.float32)
    b0 = jnp.asarray(biases[0], jnp.float32) - (input_mean * inv) @ w0
    ws = [w0] + [jnp.asarray(w, jnp.float32) for w in weights[1:]]
    bs = [b0] + [jnp.asarray(b, jnp.float32) for b in biases[1:]]

    n_layers = len(ws)
    # TODO(synk): packing assumes every layer width <= 128; wider layers need K/N tiling
    # (use 256-wide tiles on v6e/v7x MXUs when that happens).
    for w in ws:
        assert w.shape[0] <= pad and w.shape[1] <= pad

    w_slab = jnp.zeros((n_layers, pad, pad), jnp.float32)
    b_slab = jnp.zeros((n_layers, 1, pad), jnp.float32)
    for li, (w, b) in enumerate(zip(ws, bs)):
        d_in, d_out = w.shape
        w_slab = w_slab.at[li, :d_in, :d_out].set(w)
        b_slab = b_slab.at[li, 0, :d_out].set(b)
    return w_slab.astype(weight_dtype), b_slab, inv


def mlp_forward(x, w_slab, b_slab, inv, out_dim, *,
                tile_b_cap=2048, min_tiles=1, stream_dtype=None):
    """Run the packed NormalizedMLP. x: [B, in_dim] (or [in_dim]). Returns [B, out_dim] f32."""
    if x.ndim == 1:
        x = x[None, :]
    B, in_dim = x.shape
    n_layers, pad, _ = w_slab.shape
    assert in_dim <= pad and inv.shape == (in_dim,)

    # Activations stream to HBM in the weight dtype (bf16 by default) -> half the
    # per-step HBM traffic; accumulation inside the kernel stays f32.
    if stream_dtype is None:
        stream_dtype = w_slab.dtype

    # Apply the per-feature 1/std scale here: a natural-width (B x in_dim) elementwise
    # op, essentially free, and it keeps layer-0 weights unscaled for the bf16 cast.
    xs = (x.astype(jnp.float32) * inv[None, :]).astype(stream_dtype)

    # Batch tiling: one big tile (single grid step) for small/medium B; for large B the
    # fewest tiles with tile_b <= tile_b_cap (multiple of 8 sublanes, minimal padding).
    # TODO(synk): on v7x pass min_tiles=2 for large B so the "parallel" axis spans both TCs.
    tile_b_cap = max(8, _round_up(tile_b_cap, 8))
    b8 = _round_up(B, 8)
    n_tiles = max(int(min_tiles), _cdiv(b8, tile_b_cap))
    n_tiles = max(1, min(n_tiles, b8 // 8))
    tile_b = _round_up(_cdiv(B, n_tiles), 8)
    b_pad = tile_b * n_tiles

    if b_pad != B:
        xs = jnp.zeros((b_pad, in_dim), stream_dtype).at[:B, :].set(xs)

    kernel = functools.partial(_mlp_kernel, n_layers, in_dim, out_dim)

    cost = pl.CostEstimate(
        flops=2 * b_pad * pad * pad * n_layers,
        transcendentals=0,
        bytes_accessed=int(xs.size * xs.dtype.itemsize
                           + b_pad * out_dim * 4
                           + w_slab.size * w_slab.dtype.itemsize
                           + b_slab.size * b_slab.dtype.itemsize),
    )

    out = pl.pallas_call(
        kernel,
        out_shape=jax.ShapeDtypeStruct((b_pad, out_dim), jnp.float32),
        grid=(n_tiles,),
        in_specs=[
            # activations: one batch tile per grid step, natural (un-padded) lane width
            pl.BlockSpec((tile_b, in_dim), lambda i: (i, 0)),
            # packed weights / biases: constant block index -> fetched once, resident in VMEM
            # (single-buffering them via pl.Buffered(1) would save a little more VMEM; skipped
            #  to keep the call maximally portable).
            pl.BlockSpec((n_layers, pad, pad), lambda i: (0, 0, 0)),
            pl.BlockSpec((n_layers, 1, pad), lambda i: (0, 0, 0)),
        ],
        out_specs=pl.BlockSpec((tile_b, out_dim), lambda i: (i, 0)),
        compiler_params=pltpu.CompilerParams(
            # batch tiles are independent -> parallel (splits across v7x's 2 TCs)
            dimension_semantics=("parallel",),
            vmem_limit_bytes=32 * 1024 * 1024,
        ),
        cost_estimate=cost,
    )(xs, w_slab, b_slab)

    return out[:B] if b_pad != B else out


def _make_params(key, in_dim, out_dim, hidden_layers, gain=1.0):
    """Deterministic orthogonal init (matches nn.init.orthogonal_ semantics), bias = 0."""
    ortho = jax.nn.initializers.orthogonal(scale=gain)
    dims = [in_dim] + list(hidden_layers) + [out_dim]
    weights, biases = [], []
    for d_in, d_out in zip(dims[:-1], dims[1:]):
        key, sub = jax.random.split(key)
        # PyTorch Linear weight is [d_out, d_in]; store transposed as [d_in, d_out].
        w_pt = ortho(sub, (d_out, d_in), jnp.float32)
        weights.append(w_pt.T)
        biases.append(jnp.zeros((d_out,), jnp.float32))
    return weights, biases


def _reference_forward(x, input_mean, input_std, weights, biases):
    if x.ndim == 1:
        x = x[None, :]
    zero_mask = jnp.where(input_std == 0.0, 1.0, 0.0)
    h = (x - input_mean[None, :]) / ((input_std + zero_mask)[None, :])
    for i, (w, b) in enumerate(zip(weights, biases)):
        h = h @ w + b[None, :]
        if i < len(weights) - 1:
            h = jnp.maximum(h, 0.0)
    return h


if __name__ == "__main__":
    key = jax.random.PRNGKey(0)

    batch = 8
    in_dim = 8
    out_dim = 4
    hidden_layers = (32, 32)

    k_x, k_m, k_s, k_p, k_xb = jax.random.split(key, 5)
    x = jax.random.normal(k_x, (batch, in_dim), jnp.float32)
    input_mean = jax.random.normal(k_m, (in_dim,), jnp.float32)
    input_std = jnp.abs(jax.random.normal(k_s, (in_dim,), jnp.float32)) + 0.5
    # exercise the zero-std / zero_mask branch on one dim
    input_std = input_std.at[2].set(0.0)

    weights, biases = _make_params(k_p, in_dim, out_dim, hidden_layers, gain=1.0)
    ref = _reference_forward(x, input_mean, input_std, weights, biases)

    # 1) f32 weights + f32 streaming: tight numerical check of the folded/packed kernel.
    w32, b32, inv32 = fold_and_pack_params(input_mean, input_std, weights, biases,
                                           weight_dtype=jnp.float32)
    out32 = jax.block_until_ready(mlp_forward(x, w32, b32, inv32, out_dim))
    assert out32.shape == (batch, out_dim)
    assert jnp.allclose(out32, ref, atol=1e-4, rtol=1e-4), "f32 kernel mismatch vs reference"

    # 2) bf16 weights + bf16 activation streaming (MXU-native default): relaxed tolerance.
    wbf, bbf, invbf = fold_and_pack_params(input_mean, input_std, weights, biases,
                                           weight_dtype=jnp.bfloat16)
    outbf = jax.block_until_ready(mlp_forward(x, wbf, bbf, invbf, out_dim))
    assert outbf.shape == (batch, out_dim)
    assert jnp.allclose(outbf, ref, atol=1e-1, rtol=1e-1), "bf16 kernel mismatch vs reference"

    # 3) Larger ragged batch with several grid steps (small tile cap to force tiling):
    #    exercises resident weights across batch tiles + row padding.
    xb = jax.random.normal(k_xb, (300, in_dim), jnp.float32)
    refb = _reference_forward(xb, input_mean, input_std, weights, biases)
    outb = jax.block_until_ready(mlp_forward(xb, w32, b32, inv32, out_dim, tile_b_cap=128))
    assert outb.shape == (300, out_dim)
    assert jnp.allclose(outb, refb, atol=1e-4, rtol=1e-4), "batched f32 kernel mismatch"

    # 4) 1-D input path (module unsqueezes to a batch of 1).
    out1 = jax.block_until_ready(mlp_forward(x[0], w32, b32, inv32, out_dim))
    assert out1.shape == (1, out_dim)
    assert jnp.allclose(out1, ref[:1], atol=1e-4, rtol=1e-4), "1-D input path mismatch"

    print("KERNEL_OK")
</pallas_src>

<mosaic_0001>
module attributes {stable_mosaic.version = 11 : i64} {
  func.func @_mlp_kernel(%arg0: i32, %arg1: memref<8x8xf32, #tpu.memory_space<vmem>>, %arg2: memref<3x128x128xf32, #tpu.memory_space<vmem>>, %arg3: memref<3x1x128xf32, #tpu.memory_space<vmem>>, %arg4: memref<8x4xf32, #tpu.memory_space<vmem>>) attributes {dimension_semantics = [#tpu.dimension_semantics<parallel>], iteration_bounds = array<i64: 1>, scalar_prefetch = 0 : i64, scratch_operands = 0 : i64, tpu.core_type = #tpu.core_type<tc>, window_params = [{transform_indices = @transform_0, window_bounds = array<i64: 8, 8>}, {pipeline_mode = #tpu.pipeline_mode<synchronous>, transform_indices = @transform_1, window_bounds = array<i64: 3, 128, 128>}, {pipeline_mode = #tpu.pipeline_mode<synchronous>, transform_indices = @transform_2, window_bounds = array<i64: 3, 1, 128>}, {transform_indices = @transform_3, window_bounds = array<i64: 8, 4>}]} {
    %c0 = arith.constant 0 : index
    %c0_0 = arith.constant 0 : index
    %0 = vector.load %arg1[%c0, %c0_0] : memref<8x8xf32, #tpu.memory_space<vmem>>, vector<8x8xf32>
    %c0_1 = arith.constant 0 : index
    %c0_2 = arith.constant 0 : index
    %c0_3 = arith.constant 0 : index
    %1 = vector.load %arg2[%c0_1, %c0_2, %c0_3] : memref<3x128x128xf32, #tpu.memory_space<vmem>>, vector<1x128x128xf32>
    %2 = vector.shape_cast %1 : vector<1x128x128xf32> to vector<128x128xf32>
    %3 = vector.extract_strided_slice %2 {offsets = [0, 0], sizes = [8, 128], strides = [1, 1]} : vector<128x128xf32> to vector<8x128xf32>
    %c0_4 = arith.constant 0 : index
    %c0_5 = arith.constant 0 : index
    %c0_6 = arith.constant 0 : index
    %4 = vector.load %arg3[%c0_4, %c0_5, %c0_6] : memref<3x1x128xf32, #tpu.memory_space<vmem>>, vector<1x1x128xf32>
    %5 = vector.shape_cast %4 : vector<1x1x128xf32> to vector<1x128xf32>
    %cst = arith.constant dense<0.000000e+00> : vector<8x128xf32>
    %6 = tpu.matmul %0, %3, %cst {dimension_numbers = #tpu.dot_dimension_numbers<[1], [0], [0], [1], [0, 0, 1, 1], [], []>} : vector<8x8xf32>, vector<8x128xf32>, vector<8x128xf32> -> vector<8x128xf32>
    %7 = vector.broadcast %5 : vector<1x128xf32> to vector<8x128xf32>
    %8 = arith.addf %6, %7 : vector<8x128xf32>
    %cst_7 = arith.constant 0.000000e+00 : f32
    %9 = vector.broadcast %cst_7 : f32 to vector<8x128xf32>
    %10 = arith.maximumf %8, %9 : vector<8x128xf32>
    %c1 = arith.constant 1 : index
    %c0_8 = arith.constant 0 : index
    %c0_9 = arith.constant 0 : index
    %11 = vector.load %arg2[%c1, %c0_8, %c0_9] : memref<3x128x128xf32, #tpu.memory_space<vmem>>, vector<1x128x128xf32>
    %12 = vector.shape_cast %11 : vector<1x128x128xf32> to vector<128x128xf32>
    %c1_10 = arith.constant 1 : index
    %c0_11 = arith.constant 0 : index
    %c0_12 = arith.constant 0 : index
    %13 = vector.load %arg3[%c1_10, %c0_11, %c0_12] : memref<3x1x128xf32, #tpu.memory_space<vmem>>, vector<1x1x128xf32>
    %14 = vector.shape_cast %13 : vector<1x1x128xf32> to vector<1x128xf32>
    %cst_13 = arith.constant dense<0.000000e+00> : vector<8x128xf32>
    %15 = tpu.matmul %10, %12, %cst_13 {dimension_numbers = #tpu.dot_dimension_numbers<[1], [0], [0], [1], [0, 0, 1, 1], [], []>} : vector<8x128xf32>, vector<128x128xf32>, vector<8x128xf32> -> vector<8x128xf32>
    %16 = vector.broadcast %14 : vector<1x128xf32> to vector<8x128xf32>
    %17 = arith.addf %15, %16 : vector<8x128xf32>
    %cst_14 = arith.constant 0.000000e+00 : f32
    %18 = vector.broadcast %cst_14 : f32 to vector<8x128xf32>
    %19 = arith.maximumf %17, %18 : vector<8x128xf32>
    %c2 = arith.constant 2 : index
    %c0_15 = arith.constant 0 : index
    %c0_16 = arith.constant 0 : index
    %20 = vector.load %arg2[%c2, %c0_15, %c0_16] : memref<3x128x128xf32, #tpu.memory_space<vmem>>, vector<1x128x128xf32>
    %21 = vector.shape_cast %20 : vector<1x128x128xf32> to vector<128x128xf32>
    %c2_17 = arith.constant 2 : index
    %c0_18 = arith.constant 0 : index
    %c0_19 = arith.constant 0 : index
    %22 = vector.load %arg3[%c2_17, %c0_18, %c0_19] : memref<3x1x128xf32, #tpu.memory_space<vmem>>, vector<1x1x128xf32>
    %23 = vector.shape_cast %22 : vector<1x1x128xf32> to vector<1x128xf32>
    %cst_20 = arith.constant dense<0.000000e+00> : vector<8x128xf32>
    %24 = tpu.matmul %19, %21, %cst_20 {dimension_numbers = #tpu.dot_dimension_numbers<[1], [0], [0], [1], [0, 0, 1, 1], [], []>} : vector<8x128xf32>, vector<128x128xf32>, vector<8x128xf32> -> vector<8x128xf32>
    %25 = vector.broadcast %23 : vector<1x128xf32> to vector<8x128xf32>
    %26 = arith.addf %24, %25 : vector<8x128xf32>
    %27 = vector.extract_strided_slice %26 {offsets = [0, 0], sizes = [8, 4], strides = [1, 1]} : vector<8x128xf32> to vector<8x4xf32>
    %c0_21 = arith.constant 0 : index
    %c0_22 = arith.constant 0 : index
    %28 = vector.load %arg4[%c0_21, %c0_22] : memref<8x4xf32, #tpu.memory_space<vmem>>, vector<8x4xf32>
    tpu.vector_store %arg4[%c0_21, %c0_22], %27 {strides = array<i32>} : memref<8x4xf32, #tpu.memory_space<vmem>>, vector<8x4xf32>,
    return
  }
  func.func @transform_0(%arg0: i32) -> (i32, i32) {
    %c0_i32 = arith.constant 0 : i32
    %c0_i32_0 = arith.constant 0 : i32
    return %arg0, %c0_i32 : i32, i32
  }
  func.func @transform_1(%arg0: i32) -> (i32, i32, i32) {
    %c0_i32 = arith.constant 0 : i32
    %c0_i32_0 = arith.constant 0 : i32
    %c0_i32_1 = arith.constant 0 : i32
    %c0_i32_2 = arith.constant 0 : i32
    return %c0_i32, %c0_i32_0, %c0_i32_1 : i32, i32, i32
  }
  func.func @transform_2(%arg0: i32) -> (i32, i32, i32) {
    %c0_i32 = arith.constant 0 : i32
    %c0_i32_0 = arith.constant 0 : i32
    %c0_i32_1 = arith.constant 0 : i32
    %c0_i32_2 = arith.constant 0 : i32
    return %c0_i32, %c0_i32_0, %c0_i32_1 : i32, i32, i32
  }
  func.func @transform_3(%arg0: i32) -> (i32, i32) {
    %c0_i32 = arith.constant 0 : i32
    %c0_i32_0 = arith.constant 0 : i32
    return %arg0, %c0_i32 : i32, i32
  }
}

</mosaic_0001>

<llo_original>
// kernel: tpu_custom_call.1
$region0: #{tpu_custom_call.1}
  #allocation0 [shape = 'u32[]', space=smem, size = 0x4, offset = 0x4, fixed_abs, tag = 'smem constant byte address 0x4 - core index']
  #allocation1 [shape = 'u32[72,128]{1,0:T(1,128)}', space=vmem, size = 0x9000, scoped, tag = 'internal scratch']
  %s0 = inlined_call_operand.hbm [shape: f32[8,8], index: 0, kind: input, shape index: {}]
  %s1 = inlined_call_operand.hbm [shape: f32[3,128,128], index: 1, kind: input, shape index: {}]
  %s2 = inlined_call_operand.hbm [shape: f32[3,1,128], index: 2, kind: input, shape index: {}]
  %s3 = inlined_call_operand.vmem [shape: f32[8,4], index: 3, kind: output, shape index: {}]
  %s4 = sld [smem:[#allocation0]]
  $region34: #{tpu_custom_call.1} parent=0
    _
  %s6 = ssub.s32 1, %s4
  %s7 = scalar_select 0, %s6, %s4
  $region1: #{tpu_custom_call.1} parent=0
    #allocation2 [shape = 'u8[4096]{0}', space=vmem, size = 0x1000, scoped, tag = 'input window, operand 0, single buffered']
    #allocation3 [shape = 's32[1]{0}', space=sflag, size = 0x4, scoped, tag = 'scoped memory for tpu_custom_call.1']
    #allocation4 [shape = 'u8[196608]{0}', space=vmem, size = 0x30000, scoped, tag = 'input window, operand 1, single buffered']
    #allocation5 [shape = 's32[1]{0}', space=sflag, size = 0x4, scoped, tag = 'scoped memory for tpu_custom_call.1']
    #allocation6 [shape = 'u8[1536]{0}', space=vmem, size = 0x800, scoped, tag = 'input window, operand 2, single buffered']
    %8 = vsyncpa [#allocation3], 0
    %9 = vsyncpa [#allocation5], 0
    // Predicated region
    $region2: #{tpu_custom_call.1} parent=1 // pred_check
      _
    $region3: #{tpu_custom_call.1} parent=1 // pred_check_branch
      %11 = sbr.rel (0) target = $region5
    $region4: #{tpu_custom_call.1} parent=1 // pred_region
      %13 = vsyncadd [#allocation3], 0
      %s15 = sshll.u32 %s0, 4
      %s16 = int_to_ptr.hbm [resolvable:$true] %s15
      %s17 = sshll.u32 [#allocation2], 4
      %s18 = int_to_ptr.vmem [resolvable:$true] %s17
      %20 = dma.hbm_to_vmem [thread:$0]  %s16, 128, %s18, [#allocation3]
    $region5: #{tpu_custom_call.1} parent=1 // pred_fallthru
      _
    // Predicated region
    $region6: #{tpu_custom_call.1} parent=1 // pred_check
      _
    $region7: #{tpu_custom_call.1} parent=1 // pred_check_branch
      %22 = sbr.rel (0) target = $region9
    $region8: #{tpu_custom_call.1} parent=1 // pred_region
      %24 = vsyncadd [#allocation5], 0
      %s25 = sshll.u32 %s1, 4
      %s26 = int_to_ptr.hbm [resolvable:$true] %s25
      %s27 = sshll.u32 [#allocation4], 4
      %s28 = int_to_ptr.vmem [resolvable:$true] %s27
      %33 = dma.hbm_to_vmem [thread:$0]  %s26, 6144, %s28, [#allocation5], 128, 128, 8
    $region9: #{tpu_custom_call.1} parent=1 // pred_fallthru
      _
    // Predicated region
    $region10: #{tpu_custom_call.1} parent=1 // pred_check
      _
    $region11: #{tpu_custom_call.1} parent=1 // pred_check_branch
      %35 = sbr.rel (0) target = $region13
    $region12: #{tpu_custom_call.1} parent=1 // pred_region
      %37 = vsyncadd [#allocation5], 0
      %s38 = sshll.u32 %s2, 4
      %s39 = int_to_ptr.hbm [resolvable:$true] %s38
      %s40 = sshll.u32 [#allocation6], 4
      %s41 = int_to_ptr.vmem [resolvable:$true] %s40
      %46 = dma.hbm_to_vmem [thread:$0]  %s39, 48, %s41, [#allocation5], 16, 16, 1
    $region13: #{tpu_custom_call.1} parent=1 // pred_fallthru
      _
    // Predicated region
    $region14: #{tpu_custom_call.1} parent=1 // pred_check
      _
    $region15: #{tpu_custom_call.1} parent=1 // pred_check_branch
      %48 = sbr.rel (0) target = $region17
    $region16: #{tpu_custom_call.1} parent=1 // pred_region
      %50 = dma.done [#allocation3], 128
    $region17: #{tpu_custom_call.1} parent=1 // pred_fallthru
      _
    // Predicated region
    $region18: #{tpu_custom_call.1} parent=1 // pred_check
      _
    $region19: #{tpu_custom_call.1} parent=1 // pred_check_branch
      %52 = sbr.rel (0) target = $region21
    $region20: #{tpu_custom_call.1} parent=1 // pred_region
      %54 = dma.done [#allocation5], 6144
    $region21: #{tpu_custom_call.1} parent=1 // pred_fallthru
      _
    // Predicated region
    $region22: #{tpu_custom_call.1} parent=1 // pred_check
      _
    $region23: #{tpu_custom_call.1} parent=1 // pred_check_branch
      %56 = sbr.rel (0) target = $region25
    $region24: #{tpu_custom_call.1} parent=1 // pred_region
      %58 = dma.done [#allocation5], 48
    $region25: #{tpu_custom_call.1} parent=1 // pred_fallthru
      _
    %v59 = vld [vmem:[#allocation2] sm:$0xff]
    %v60 = vld [vmem:[#allocation4] sm:$0xff]
    %v61 = vld [vmem:[#allocation6] sm:$0x1]
    %v63 = vperm.slane %v61, 0
    %vm65 = vcmask 64512
    %v67 = vsel %vm65, %v59, 0
    %69 = vmatpush.msra.mxu0 0.0
    %70 = vmatpush.msra.mxu0 0.0
    %71 = vmatpush.msra.mxu0 0.0
    %72 = vmatpush.msra.mxu0 0.0
    %73 = vmatpush.msra.mxu0 0.0
    %74 = vmatpush.msra.mxu0 0.0
    %75 = vmatpush.msra.mxu0 0.0
    %76 = vmatpush.msra.mxu0 0.0
    %77 = vmatpush.msra.mxu0 0.0
    %78 = vmatpush.msra.mxu0 0.0
    %79 = vmatpush.msra.mxu0 0.0
    %80 = vmatpush.msra.mxu0 0.0
    %81 = vmatpush.msra.mxu0 0.0
    %82 = vmatpush.msra.mxu0 0.0
    %83 = vmatpush.msra.mxu0 0.0
    %84 = vmatpush.msra.mxu0 %v60
    %85 = vmatmul.f32.gmra.mxu0 %v67
    %v86 = vpop.f32.mrf.mxu0
    %v87 = vadd.f32 %v63, %v86
    %88 = vdwg.mxu0
    %v89 = vmax.f32 %v87, 0.0
    %s90 = scalar_lea.vmem [#allocation4], 128
    %v91 = vld [vmem:[%s90] sm:$0xff]
    %v92 = vld [vmem:[%s90 + $0x8] sm:$0xff]
    %v93 = vld [vmem:[%s90 + $0x10] sm:$0xff]
    %v94 = vld [vmem:[%s90 + $0x18] sm:$0xff]
    %v95 = vld [vmem:[%s90 + $0x20] sm:$0xff]
    %v96 = vld [vmem:[%s90 + $0x28] sm:$0xff]
    %v97 = vld [vmem:[%s90 + $0x30] sm:$0xff]
    %v98 = vld [vmem:[%s90 + $0x38] sm:$0xff]
    %v99 = vld [vmem:[%s90 + $0x40] sm:$0xff]
    %v100 = vld [vmem:[%s90 + $0x48] sm:$0xff]
    %v101 = vld [vmem:[%s90 + $0x50] sm:$0xff]
    %v102 = vld [vmem:[%s90 + $0x58] sm:$0xff]
    %v103 = vld [vmem:[%s90 + $0x60] sm:$0xff]
    %v104 = vld [vmem:[%s90 + $0x68] sm:$0xff]
    %v105 = vld [vmem:[%s90 + $0x70] sm:$0xff]
    %v106 = vld [vmem:[%s90 + $0x78] sm:$0xff]
    %s107 = scalar_lea.vmem [#allocation6], 1
    %v108 = vld [vmem:[%s107] sm:$0x1]
    %v110 = vperm.slane %v108, 0
    %112 = vmatpush.msra.mxu0 %v106
    %113 = vmatpush.msra.mxu0 %v105
    %114 = vmatpush.msra.mxu0 %v104
    %115 = vmatpush.msra.mxu0 %v103
    %116 = vmatpush.msra.mxu0 %v102
    %117 = vmatpush.msra.mxu0 %v101
    %118 = vmatpush.msra.mxu0 %v100
    %119 = vmatpush.msra.mxu0 %v99
    %120 = vmatpush.msra.mxu0 %v98
    %121 = vmatpush.msra.mxu0 %v97
    %122 = vmatpush.msra.mxu0 %v96
    %123 = vmatpush.msra.mxu0 %v95
    %124 = vmatpush.msra.mxu0 %v94
    %125 = vmatpush.msra.mxu0 %v93
    %126 = vmatpush.msra.mxu0 %v92
    %127 = vmatpush.msra.mxu0 %v91
    %128 = vmatmul.f32.gmra.mxu0 %v89
    %v129 = vpop.f32.mrf.mxu0
    %v130 = vadd.f32 %v110, %v129
    %131 = vdwg.mxu0
    %v132 = vmax.f32 %v130, 0.0
    %s133 = scalar_lea.vmem [#allocation4], 256
    %v134 = vld [vmem:[%s133] sm:$0xff]
    %v135 = vld [vmem:[%s133 + $0x8] sm:$0xff]
    %v136 = vld [vmem:[%s133 + $0x10] sm:$0xff]
    %v137 = vld [vmem:[%s133 + $0x18] sm:$0xff]
    %v138 = vld [vmem:[%s133 + $0x20] sm:$0xff]
    %v139 = vld [vmem:[%s133 + $0x28] sm:$0xff]
    %v140 = vld [vmem:[%s133 + $0x30] sm:$0xff]
    %v141 = vld [vmem:[%s133 + $0x38] sm:$0xff]
    %v142 = vld [vmem:[%s133 + $0x40] sm:$0xff]
    %v143 = vld [vmem:[%s133 + $0x48] sm:$0xff]
    %v144 = vld [vmem:[%s133 + $0x50] sm:$0xff]
    %v145 = vld [vmem:[%s133 + $0x58] sm:$0xff]
    %v146 = vld [vmem:[%s133 + $0x60] sm:$0xff]
    %v147 = vld [vmem:[%s133 + $0x68] sm:$0xff]
    %v148 = vld [vmem:[%s133 + $0x70] sm:$0xff]
    %v149 = vld [vmem:[%s133 + $0x78] sm:$0xff]
    %s150 = scalar_lea.vmem [#allocation6], 2
    %v151 = vld [vmem:[%s150] sm:$0x1]
    %v153 = vperm.slane %v151, 0
    %155 = vmatpush.msra.mxu0 %v149
    %156 = vmatpush.msra.mxu0 %v148
    %157 = vmatpush.msra.mxu0 %v147
    %158 = vmatpush.msra.mxu0 %v146
    %159 = vmatpush.msra.mxu0 %v145
    %160 = vmatpush.msra.mxu0 %v144
    %161 = vmatpush.msra.mxu0 %v143
    %162 = vmatpush.msra.mxu0 %v142
    %163 = vmatpush.msra.mxu0 %v141
    %164 = vmatpush.msra.mxu0 %v140
    %165 = vmatpush.msra.mxu0 %v139
    %166 = vmatpush.msra.mxu0 %v138
    %167 = vmatpush.msra.mxu0 %v137
    %168 = vmatpush.msra.mxu0 %v136
    %169 = vmatpush.msra.mxu0 %v135
    %170 = vmatpush.msra.mxu0 %v134
    %171 = vmatmul.f32.gmra.mxu0 %v132
    %v172 = vpop.f32.mrf.mxu0
    %v173 = vadd.f32 %v153, %v172
    %174 = vdwg.mxu0
    %vm175 = vcmask 31744
    %176 = vst.msk [vmem:[%s3] sm:$0xff] %vm175, %v173
    // Predicated region
    $region26: #{tpu_custom_call.1} parent=1 // pred_check
      _
    $region27: #{tpu_custom_call.1} parent=1 // pred_check_branch
      %178 = sbr.rel (0) target = $region29
    $region28: #{tpu_custom_call.1} parent=1 // pred_region
      _
    $region29: #{tpu_custom_call.1} parent=1 // pred_fallthru
      _
    // Predicated region
    $region30: #{tpu_custom_call.1} parent=1 // pred_check
      _
    $region31: #{tpu_custom_call.1} parent=1 // pred_check_branch
      %180 = sbr.rel (0) target = $region33
    $region32: #{tpu_custom_call.1} parent=1 // pred_region
      _
    $region33: #{tpu_custom_call.1} parent=1 // pred_fallthru
      _
    %181 = vsyncpa [#allocation3], 1
    %182 = vsyncpa [#allocation5], 1

</llo_original>
